<compile_context>
chip_gen: v6e
topology: v6e:2x2x1
jax: 0.10.0
libtpu: 0.0.40
codegen_flags: <defaults>
</compile_context>

<pallas_src>
import functools

import jax
import jax.numpy as jnp
from jax.experimental import pallas as pl
from jax.experimental.pallas import tpu as pltpu


def _cdiv(a, b):
    return -(-a // b)


def _round_up(x, m):
    return ((x + m - 1) // m) * m


# ----------------------------- Pallas kernels -------------------------------

def _conv_bn_relu_kernel_single_k(p_ref, w_ref, b_ref, o_ref, *, apply_relu):
    # Single K step: no accumulator scratch; write the epilogue result directly.
    # p_ref: (tm, K_pad) bf16   w_ref: (K_pad, tn) bf16
    # b_ref: (1, tn) f32        o_ref: (tm, tn) f32
    y = jnp.dot(p_ref[...], w_ref[...], preferred_element_type=jnp.float32)
    y = y + b_ref[...]
    if apply_relu:
        y = jnp.maximum(y, 0.0)
    o_ref[...] = y.astype(o_ref.dtype)


def _conv_bn_relu_kernel_multi_k(p_ref, w_ref, b_ref, o_ref, acc_ref, *,
                                 apply_relu):
    # p_ref: (tm, tk) bf16   w_ref: (tk, tn) bf16   b_ref: (1, tn) f32
    # o_ref: (tm, tn) f32    acc_ref: (tm, tn) f32 VMEM scratch
    k = pl.program_id(2)

    @pl.when(k == 0)
    def _():
        acc_ref[...] = jnp.zeros_like(acc_ref)

    acc_ref[...] += jnp.dot(p_ref[...], w_ref[...],
                            preferred_element_type=jnp.float32)

    @pl.when(k == pl.num_programs(2) - 1)
    def _():
        y = acc_ref[...] + b_ref[...]
        if apply_relu:
            y = jnp.maximum(y, 0.0)
        o_ref[...] = y.astype(o_ref.dtype)


def _fused_matmul_bias_relu(patches, w_t, bias, *, apply_relu, tm, tn, tk,
                            vmem_limit):
    """patches (M,K) bf16 @ w_t (K,Cout) bf16 + bias (1,Cout) f32 -> f32."""
    M, K = patches.shape
    Kw, Cout = w_t.shape
    assert K == Kw and M % tm == 0 and K % tk == 0 and Cout % tn == 0

    nm, nj, nk = M // tm, Cout // tn, K // tk

    flops = 2 * M * K * Cout
    # Actual tiled-matmul HBM traffic: patches re-streamed once per Cout tile,
    # weight re-streamed once per M tile (k is the innermost grid axis); in the
    # single-K / single-Cout-tile path both collapse to one pass.
    bytes_accessed = (nj * patches.size * patches.dtype.itemsize
                      + nm * w_t.size * w_t.dtype.itemsize
                      + nj * bias.size * bias.dtype.itemsize
                      + M * Cout * 4)
    cost = pl.CostEstimate(flops=flops, transcendentals=0,
                           bytes_accessed=bytes_accessed)

    if nk == 1:
        # Weight / bias block indices do not depend on i, so the weight stays
        # VMEM-resident across the M loop instead of being re-fetched per tile.
        cparams = pltpu.CompilerParams(
            dimension_semantics=("parallel", "parallel"),
            vmem_limit_bytes=vmem_limit)
        return pl.pallas_call(
            functools.partial(_conv_bn_relu_kernel_single_k,
                              apply_relu=apply_relu),
            out_shape=jax.ShapeDtypeStruct((M, Cout), jnp.float32),
            grid_spec=pltpu.PrefetchScalarGridSpec(
                num_scalar_prefetch=0,
                grid=(nm, nj),
                in_specs=[
                    pl.BlockSpec((tm, tk), lambda i, j: (i, 0)),
                    pl.BlockSpec((tk, tn), lambda i, j: (0, j)),
                    pl.BlockSpec((1, tn), lambda i, j: (0, j)),
                ],
                out_specs=pl.BlockSpec((tm, tn), lambda i, j: (i, j)),
            ),
            compiler_params=cparams,
            cost_estimate=cost,
        )(patches, w_t, bias)

    cparams = pltpu.CompilerParams(
        dimension_semantics=("parallel", "parallel", "arbitrary"),
        vmem_limit_bytes=vmem_limit)
    return pl.pallas_call(
        functools.partial(_conv_bn_relu_kernel_multi_k, apply_relu=apply_relu),
        out_shape=jax.ShapeDtypeStruct((M, Cout), jnp.float32),
        grid_spec=pltpu.PrefetchScalarGridSpec(
            num_scalar_prefetch=0,
            grid=(nm, nj, nk),
            in_specs=[
                pl.BlockSpec((tm, tk), lambda i, j, k: (i, k)),
                pl.BlockSpec((tk, tn), lambda i, j, k: (k, j)),
                pl.BlockSpec((1, tn), lambda i, j, k: (0, j)),
            ],
            out_specs=pl.BlockSpec((tm, tn), lambda i, j, k: (i, j)),
            scratch_shapes=[pltpu.VMEM((tm, tn), jnp.float32)],
        ),
        compiler_params=cparams,
        cost_estimate=cost,
    )(patches, w_t, bias)


# --------------------------- tiling heuristics -------------------------------

def _tpu_config():
    """Returns (vmem_budget_bytes, is_v7x, mxu_width)."""
    kind = ""
    try:
        kind = jax.devices()[0].device_kind.lower()
    except Exception:
        pass
    if "v7" in kind:
        # 64 MiB physical VMEM per TensorCore -> leave headroom for Mosaic
        # internal scratch / semaphores.
        return 52 * 1024 * 1024, True, 256
    if "v6" in kind:
        return 100 * 1024 * 1024, False, 256       # 128 MiB physical
    if "v5" in kind or "v4" in kind:
        return 100 * 1024 * 1024, False, 128       # 128 MiB physical
    # Unknown chip / interpret mode: be conservative.
    return 48 * 1024 * 1024, False, 128


def _vmem_footprint(tm, tk, tn, multi_k):
    f = 2 * tm * tk * 2          # patches tile, double-buffered bf16
    f += 2 * tk * tn * 2         # weight tile, double-buffered bf16
    f += 2 * tn * 4              # bias tile, double-buffered f32
    f += 2 * tm * tn * 4         # output tile, double-buffered f32
    if multi_k:
        f += tm * tn * 4         # f32 accumulator scratch
    return f


def _select_tiles(M, K, Cout, budget, is_v7x, mxu):
    # --- Cout padding / tiling: lane-dense output stores, full MXU width ----
    cout_align = 256 if (mxu == 256 and Cout >= 192) else 128
    Cout_pad = _round_up(Cout, cout_align)
    tn_max = 512 if is_v7x else 1024
    if Cout_pad <= tn_max:
        tn, nj = Cout_pad, 1
    else:
        nj = _cdiv(Cout_pad, tn_max)
        tn = _round_up(_cdiv(Cout_pad, nj), cout_align)
        Cout_pad = tn * nj

    # --- K padding / tiling --------------------------------------------------
    k_align = 128 if K >= 512 else 16   # bf16 sublane packing for tiny-K stems
    K_pad = _round_up(K, k_align)
    # Single K step whenever the double-buffered (K_pad, tn) weight tile fits
    # comfortably in VMEM -> weight stays resident, no accumulator needed.
    weight_budget = (12 if is_v7x else 16) * 1024 * 1024
    if 2 * K_pad * tn * 2 <= weight_budget:
        tk = K_pad
    else:
        tk = 512
        K_pad = _round_up(K_pad, tk)
    nk = K_pad // tk

    # --- M tiling: largest tile whose computed footprint fits the budget ----
    tm_max = 512 if is_v7x else 1024
    tm = min(tm_max, max(128, _round_up(M, 128)))
    while tm > 128 and _vmem_footprint(tm, tk, tn, nk > 1) > int(0.85 * budget):
        tm //= 2
    if is_v7x:
        # Keep >= 2 M-steps when possible so the parallel axis can shard
        # across v7x's 2 TensorCores; pure overhead on v5e/v6e (serial grid).
        while tm > 128 and _cdiv(M, tm) < 2:
            tm //= 2
    M_pad = _round_up(M, tm)

    return tm, tk, tn, M_pad, K_pad, Cout_pad


# ------------------------------- JAX glue -----------------------------------

def _im2col(x, kh, kw, stride, padding, dilation):
    """x: (N, C, H, W) -> patches (N*Ho*Wo, C*kh*kw), K ordered as (c, i, j)."""
    N, C, H, W = x.shape
    Ho = (H + 2 * padding - dilation * (kh - 1) - 1) // stride + 1
    Wo = (W + 2 * padding - dilation * (kw - 1) - 1) // stride + 1
    xp = jnp.pad(x, ((0, 0), (0, 0), (padding, padding), (padding, padding)))
    cols = []
    for i in range(kh):
        for j in range(kw):
            patch = xp[:, :,
                       i * dilation: i * dilation + stride * Ho: stride,
                       j * dilation: j * dilation + stride * Wo: stride]
            cols.append(patch)  # (N, C, Ho, Wo)
    cols = jnp.stack(cols, axis=0).reshape(kh, kw, N, C, Ho, Wo)
    # -> (N, Ho, Wo, C, kh, kw): K ordering matches weight.reshape(Cout, C*kh*kw)
    cols = jnp.transpose(cols, (2, 4, 5, 3, 0, 1))
    return cols.reshape(N * Ho * Wo, C * kh * kw), Ho, Wo


class BasicConv2dPallas:
    """Synthetic, deterministic-parameter equivalent of BasicConv2d (eval mode)."""

    def __init__(self, in_planes, out_planes, kernel_size, stride=1, padding=0,
                 dilation=1, groups=1, relu=True, bn=True, bias=False, key=None):
        assert groups == 1, "groups != 1 not implemented"
        assert not bias, "BasicConv2d uses bias=False"
        self.in_planes = in_planes
        self.out_channels = out_planes
        self.kh = self.kw = kernel_size
        self.stride = stride
        self.padding = padding
        self.dilation = dilation
        self.relu = relu
        self.bn = bn

        key = jax.random.PRNGKey(42) if key is None else key
        kw_, kg, kb, km, kv = jax.random.split(key, 5)
        fan_in = in_planes * kernel_size * kernel_size
        # deterministic conv weight (Cout, Cin, kh, kw)
        self.weight = (jax.random.normal(
            kw_, (out_planes, in_planes, kernel_size, kernel_size),
            dtype=jnp.float32) / jnp.sqrt(fan_in))
        # deterministic BN parameters (eval-mode / running stats)
        self.gamma = 1.0 + 0.1 * jax.random.normal(kg, (out_planes,), jnp.float32)
        self.beta = 0.1 * jax.random.normal(kb, (out_planes,), jnp.float32)
        self.running_mean = 0.1 * jax.random.normal(km, (out_planes,), jnp.float32)
        self.running_var = 1.0 + 0.1 * jax.random.uniform(kv, (out_planes,), jnp.float32)
        self.eps = 1e-5

    def __call__(self, x):
        # x: (N, C_in, H, W) float32, NCHW
        N = x.shape[0]
        # bf16 MXU operands: cast *before* im2col so the patch matrix is built,
        # transposed and padded at half the HBM bytes.
        xb = x.astype(jnp.bfloat16)

        if self.kh == 1 and self.kw == 1:
            # 1x1 conv: im2col degenerates to NCHW -> NHWC (+ stride/pad).
            p = self.padding
            xp = jnp.pad(xb, ((0, 0), (0, 0), (p, p), (p, p))) if p else xb
            xs = xp[:, :, ::self.stride, ::self.stride]
            Ho, Wo = xs.shape[2], xs.shape[3]
            patches = jnp.transpose(xs, (0, 2, 3, 1)).reshape(
                N * Ho * Wo, self.in_planes)
        else:
            patches, Ho, Wo = _im2col(xb, self.kh, self.kw, self.stride,
                                      self.padding, self.dilation)

        M = N * Ho * Wo
        K = self.in_planes * self.kh * self.kw
        Cout = self.out_channels

        # Fold BN into per-channel scale/bias (eval mode), scale into weight.
        if self.bn:
            scale = self.gamma / jnp.sqrt(self.running_var + self.eps)
            bias = self.beta - self.running_mean * scale
        else:
            scale = jnp.ones((Cout,), jnp.float32)
            bias = jnp.zeros((Cout,), jnp.float32)
        w_t = (self.weight.reshape(Cout, K) * scale[:, None]).T  # (K, Cout) f32
        w_t = w_t.astype(jnp.bfloat16)

        # --- per-generation, footprint-driven tiling -------------------------
        budget, is_v7x, mxu = _tpu_config()
        tm, tk, tn, M_pad, K_pad, Cout_pad = _select_tiles(
            M, K, Cout, budget, is_v7x, mxu)

        patches_p = jnp.pad(patches, ((0, M_pad - M), (0, K_pad - K)))
        w_p = jnp.pad(w_t, ((0, K_pad - K), (0, Cout_pad - Cout)))
        bias_p = jnp.pad(bias, (0, Cout_pad - Cout)).reshape(1, Cout_pad)

        out_flat = _fused_matmul_bias_relu(
            patches_p, w_p, bias_p, apply_relu=self.relu,
            tm=tm, tn=tn, tk=tk, vmem_limit=budget)

        out_flat = out_flat[:M, :Cout]                      # drop padding
        out = out_flat.reshape(N, Ho, Wo, Cout)             # NHWC
        # TODO(synk): this NHWC->NCHW transpose is a full extra HBM pass; skip
        # it when the surrounding network can consume NHWC directly.
        return jnp.transpose(out, (0, 3, 1, 2))             # -> NCHW (torch)


# ---------------------------- reference check --------------------------------

def _reference(module, x):
    out = jax.lax.conv_general_dilated(
        x, module.weight,
        window_strides=(module.stride, module.stride),
        padding=[(module.padding, module.padding)] * 2,
        rhs_dilation=(module.dilation, module.dilation),
        dimension_numbers=("NCHW", "OIHW", "NCHW"))
    if module.bn:
        scale = module.gamma / jnp.sqrt(module.running_var + module.eps)
        bias = module.beta - module.running_mean * scale
        out = out * scale[None, :, None, None] + bias[None, :, None, None]
    if module.relu:
        out = jnp.maximum(out, 0.0)
    return out


if __name__ == "__main__":
    key = jax.random.PRNGKey(0)
    kx, kp = jax.random.split(key)

    N, C_in, H, W = 2, 4, 16, 16
    C_out, ksize, pad = 8, 3, 1

    x = jax.random.normal(kx, (N, C_in, H, W), dtype=jnp.float32)
    mod = BasicConv2dPallas(C_in, C_out, kernel_size=ksize, stride=1,
                            padding=pad, relu=True, bn=True, key=kp)

    out = mod(x)
    out = jax.block_until_ready(out)

    ref = _reference(mod, x)
    assert out.shape == (N, C_out, H, W)
    # bf16 MXU operands / bf16 im2col -> loosen tolerance vs the f32 reference.
    assert jnp.allclose(out, ref, atol=2e-2, rtol=2e-2), "mismatch vs reference"

    print("KERNEL_OK")
</pallas_src>

<mosaic_0001>
module attributes {stable_mosaic.version = 11 : i64} {
  func.func @_conv_bn_relu_kernel_single_k(%arg0: i32, %arg1: i32, %arg2: memref<512x48xbf16, #tpu.memory_space<vmem>>, %arg3: memref<48x128xbf16, #tpu.memory_space<vmem>>, %arg4: memref<1x128xf32, #tpu.memory_space<vmem>>, %arg5: memref<512x128xf32, #tpu.memory_space<vmem>>) attributes {dimension_semantics = [#tpu.dimension_semantics<parallel>, #tpu.dimension_semantics<parallel>], iteration_bounds = array<i64: 1, 1>, scalar_prefetch = 0 : i64, scratch_operands = 0 : i64, tpu.core_type = #tpu.core_type<tc>, window_params = [{transform_indices = @transform_0, window_bounds = array<i64: 512, 48>}, {transform_indices = @transform_1, window_bounds = array<i64: 48, 128>}, {transform_indices = @transform_2, window_bounds = array<i64: 1, 128>}, {transform_indices = @transform_3, window_bounds = array<i64: 512, 128>}]} {
    %c0 = arith.constant 0 : index
    %c0_0 = arith.constant 0 : index
    %0 = vector.load %arg2[%c0, %c0_0] : memref<512x48xbf16, #tpu.memory_space<vmem>>, vector<512x48xbf16>
    %c0_1 = arith.constant 0 : index
    %c0_2 = arith.constant 0 : index
    %1 = vector.load %arg3[%c0_1, %c0_2] : memref<48x128xbf16, #tpu.memory_space<vmem>>, vector<48x128xbf16>
    %cst = arith.constant dense<0.000000e+00> : vector<512x128xf32>
    %2 = tpu.matmul %0, %1, %cst {dimension_numbers = #tpu.dot_dimension_numbers<[1], [0], [0], [1], [0, 0, 1, 1], [], []>} : vector<512x48xbf16>, vector<48x128xbf16>, vector<512x128xf32> -> vector<512x128xf32>
    %c0_3 = arith.constant 0 : index
    %c0_4 = arith.constant 0 : index
    %3 = vector.load %arg4[%c0_3, %c0_4] : memref<1x128xf32, #tpu.memory_space<vmem>>, vector<1x128xf32>
    %4 = vector.broadcast %3 : vector<1x128xf32> to vector<512x128xf32>
    %5 = arith.addf %2, %4 : vector<512x128xf32>
    %cst_5 = arith.constant 0.000000e+00 : f32
    %6 = vector.broadcast %cst_5 : f32 to vector<512x128xf32>
    %7 = arith.maximumf %5, %6 : vector<512x128xf32>
    %c0_6 = arith.constant 0 : index
    %c0_7 = arith.constant 0 : index
    %8 = vector.load %arg5[%c0_6, %c0_7] : memref<512x128xf32, #tpu.memory_space<vmem>>, vector<512x128xf32>
    tpu.vector_store %arg5[%c0_6, %c0_7], %7 {strides = array<i32>} : memref<512x128xf32, #tpu.memory_space<vmem>>, vector<512x128xf32>,
    return
  }
  func.func @transform_0(%arg0: i32, %arg1: i32) -> (i32, i32) {
    %c0_i32 = arith.constant 0 : i32
    %c0_i32_0 = arith.constant 0 : i32
    return %arg0, %c0_i32 : i32, i32
  }
  func.func @transform_1(%arg0: i32, %arg1: i32) -> (i32, i32) {
    %c0_i32 = arith.constant 0 : i32
    %c0_i32_0 = arith.constant 0 : i32
    return %c0_i32, %arg1 : i32, i32
  }
  func.func @transform_2(%arg0: i32, %arg1: i32) -> (i32, i32) {
    %c0_i32 = arith.constant 0 : i32
    %c0_i32_0 = arith.constant 0 : i32
    return %c0_i32, %arg1 : i32, i32
  }
  func.func @transform_3(%arg0: i32, %arg1: i32) -> (i32, i32) {
    %c0_i32 = arith.constant 0 : i32
    return %arg0, %arg1 : i32, i32
  }
}

</mosaic_0001>

<llo_original>
// kernel: tpu_custom_call.1
$region0: #{tpu_custom_call.1}
  #allocation0 [shape = 'u32[]', space=smem, size = 0x4, offset = 0x4, fixed_abs, tag = 'smem constant byte address 0x4 - core index']
  #allocation1 [shape = 'u32[144,128]{1,0:T(1,128)}', space=vmem, size = 0x12000, scoped, tag = 'internal scratch']
  %s0 = inlined_call_operand.vmem [shape: bf16[512,48], index: 0, kind: input, shape index: {}]
  %s1 = inlined_call_operand.vmem [shape: bf16[48,128], index: 1, kind: input, shape index: {}]
  %s2 = inlined_call_operand.vmem [shape: f32[1,128], index: 2, kind: input, shape index: {}]
  %s3 = inlined_call_operand.hbm [shape: f32[512,128], index: 3, kind: output, shape index: {}]
  %s4 = sld [smem:[#allocation0]]
  $region22: #{tpu_custom_call.1} parent=0
    _
  %s6 = ssub.s32 1, %s4
  %s7 = scalar_select 0, %s6, %s4
  $region1: #{tpu_custom_call.1} parent=0
    #allocation2 [shape = 'u8[262144]{0}', space=vmem, size = 0x40000, scoped, tag = 'output window, operand 0, single buffered']
    #allocation3 [shape = 's32[1]{0}', space=sflag, size = 0x4, scoped, tag = 'scoped memory for tpu_custom_call.1']
    %8 = vsyncpa [#allocation3], 0
    // Predicated region
    $region2: #{tpu_custom_call.1} parent=1 // pred_check
      _
    $region3: #{tpu_custom_call.1} parent=1 // pred_check_branch
      %10 = sbr.rel (0) target = $region5
    $region4: #{tpu_custom_call.1} parent=1 // pred_region
      _
    $region5: #{tpu_custom_call.1} parent=1 // pred_fallthru
      _
    // Predicated region
    $region6: #{tpu_custom_call.1} parent=1 // pred_check
      _
    $region7: #{tpu_custom_call.1} parent=1 // pred_check_branch
      %12 = sbr.rel (0) target = $region9
    $region8: #{tpu_custom_call.1} parent=1 // pred_region
      _
    $region9: #{tpu_custom_call.1} parent=1 // pred_fallthru
      _
    // Predicated region
    $region10: #{tpu_custom_call.1} parent=1 // pred_check
      _
    $region11: #{tpu_custom_call.1} parent=1 // pred_check_branch
      %14 = sbr.rel (0) target = $region13
    $region12: #{tpu_custom_call.1} parent=1 // pred_region
      _
    $region13: #{tpu_custom_call.1} parent=1 // pred_fallthru
      _
    %v16 = vld [vmem:[%s0] sm:$0xf]
    %v17 = vld [vmem:[%s0 + $0x4] sm:$0xf]
    %v18 = vld [vmem:[%s0 + $0x8] sm:$0xf]
    %v19 = vld [vmem:[%s0 + $0xc] sm:$0xf]
    %v20 = vld [vmem:[%s0 + $0x10] sm:$0xf]
    %v21 = vld [vmem:[%s0 + $0x14] sm:$0xf]
    %v22 = vld [vmem:[%s0 + $0x18] sm:$0xf]
    %v23 = vld [vmem:[%s0 + $0x1c] sm:$0xf]
    %v24 = vld [vmem:[%s0 + $0x20] sm:$0xf]
    %v25 = vld [vmem:[%s0 + $0x24] sm:$0xf]
    %v26 = vld [vmem:[%s0 + $0x28] sm:$0xf]
    %v27 = vld [vmem:[%s0 + $0x2c] sm:$0xf]
    %v28 = vld [vmem:[%s0 + $0x30] sm:$0xf]
    %v29 = vld [vmem:[%s0 + $0x34] sm:$0xf]
    %v30 = vld [vmem:[%s0 + $0x38] sm:$0xf]
    %v31 = vld [vmem:[%s0 + $0x3c] sm:$0xf]
    %v32 = vld [vmem:[%s0 + $0x40] sm:$0xf]
    %v33 = vld [vmem:[%s0 + $0x44] sm:$0xf]
    %v34 = vld [vmem:[%s0 + $0x48] sm:$0xf]
    %v35 = vld [vmem:[%s0 + $0x4c] sm:$0xf]
    %v36 = vld [vmem:[%s0 + $0x50] sm:$0xf]
    %v37 = vld [vmem:[%s0 + $0x54] sm:$0xf]
    %v38 = vld [vmem:[%s0 + $0x58] sm:$0xf]
    %v39 = vld [vmem:[%s0 + $0x5c] sm:$0xf]
    %v40 = vld [vmem:[%s0 + $0x60] sm:$0xf]
    %v41 = vld [vmem:[%s0 + $0x64] sm:$0xf]
    %v42 = vld [vmem:[%s0 + $0x68] sm:$0xf]
    %v43 = vld [vmem:[%s0 + $0x6c] sm:$0xf]
    %v44 = vld [vmem:[%s0 + $0x70] sm:$0xf]
    %v45 = vld [vmem:[%s0 + $0x74] sm:$0xf]
    %v46 = vld [vmem:[%s0 + $0x78] sm:$0xf]
    %v47 = vld [vmem:[%s0 + $0x7c] sm:$0xf]
    %v48 = vld [vmem:[%s0 + $0x80] sm:$0xf]
    %v49 = vld [vmem:[%s0 + $0x84] sm:$0xf]
    %v50 = vld [vmem:[%s0 + $0x88] sm:$0xf]
    %v51 = vld [vmem:[%s0 + $0x8c] sm:$0xf]
    %v52 = vld [vmem:[%s0 + $0x90] sm:$0xf]
    %v53 = vld [vmem:[%s0 + $0x94] sm:$0xf]
    %v54 = vld [vmem:[%s0 + $0x98] sm:$0xf]
    %v55 = vld [vmem:[%s0 + $0x9c] sm:$0xf]
    %v56 = vld [vmem:[%s0 + $0xa0] sm:$0xf]
    %v57 = vld [vmem:[%s0 + $0xa4] sm:$0xf]
    %v58 = vld [vmem:[%s0 + $0xa8] sm:$0xf]
    %v59 = vld [vmem:[%s0 + $0xac] sm:$0xf]
    %v60 = vld [vmem:[%s0 + $0xb0] sm:$0xf]
    %v61 = vld [vmem:[%s0 + $0xb4] sm:$0xf]
    %v62 = vld [vmem:[%s0 + $0xb8] sm:$0xf]
    %v63 = vld [vmem:[%s0 + $0xbc] sm:$0xf]
    %v64 = vld [vmem:[%s0 + $0xc0] sm:$0xf]
    %v65 = vld [vmem:[%s0 + $0xc4] sm:$0xf]
    %v66 = vld [vmem:[%s0 + $0xc8] sm:$0xf]
    %v67 = vld [vmem:[%s0 + $0xcc] sm:$0xf]
    %v68 = vld [vmem:[%s0 + $0xd0] sm:$0xf]
    %v69 = vld [vmem:[%s0 + $0xd4] sm:$0xf]
    %v70 = vld [vmem:[%s0 + $0xd8] sm:$0xf]
    %v71 = vld [vmem:[%s0 + $0xdc] sm:$0xf]
    %v72 = vld [vmem:[%s0 + $0xe0] sm:$0xf]
    %v73 = vld [vmem:[%s0 + $0xe4] sm:$0xf]
    %v74 = vld [vmem:[%s0 + $0xe8] sm:$0xf]
    %v75 = vld [vmem:[%s0 + $0xec] sm:$0xf]
    %v76 = vld [vmem:[%s0 + $0xf0] sm:$0xf]
    %v77 = vld [vmem:[%s0 + $0xf4] sm:$0xf]
    %v78 = vld [vmem:[%s0 + $0xf8] sm:$0xf]
    %v79 = vld [vmem:[%s0 + $0xfc] sm:$0xf]
    %v80 = vld [vmem:[%s1] sm:$0xf]
    %v81 = vld [vmem:[%s1 + $0x4] sm:$0xf]
    %v82 = vld [vmem:[%s1 + $0x8] sm:$0xf]
    %v83 = vld [vmem:[%s1 + $0xc] sm:$0xf]
    %v84 = vld [vmem:[%s1 + $0x10] sm:$0xf]
    %v85 = vld [vmem:[%s1 + $0x14] sm:$0xf]
    %v86 = vld [vmem:[%s2] sm:$0x1]
    %v88 = vlaneseq
    %v89 = vshrl.u32 %v88, 7
    %v90 = vsub.s32 0, %v89
    %v91 = vrot.slane %v86, %v90
    %v157 = vunpack.c.l.b16 %v16
    %v158 = vunpack.c.l.b16 %v17
    %v159 = vunpack.c.l.b16 %v18
    %v160 = vunpack.c.l.b16 %v19
    %v161 = vunpack.c.l.b16 %v20
    %v162 = vunpack.c.l.b16 %v21
    %v163 = vunpack.c.l.b16 %v22
    %v164 = vunpack.c.l.b16 %v23
    %v165 = vunpack.c.l.b16 %v24
    %v166 = vunpack.c.l.b16 %v25
    %v167 = vunpack.c.l.b16 %v26
    %v168 = vunpack.c.l.b16 %v27
    %v169 = vunpack.c.l.b16 %v28
    %v170 = vunpack.c.l.b16 %v29
    %v171 = vunpack.c.l.b16 %v30
    %v172 = vunpack.c.l.b16 %v31
    %v173 = vunpack.c.l.b16 %v32
    %v174 = vunpack.c.l.b16 %v33
    %v175 = vunpack.c.l.b16 %v34
    %v176 = vunpack.c.l.b16 %v35
    %v177 = vunpack.c.l.b16 %v36
    %v178 = vunpack.c.l.b16 %v37
    %v179 = vunpack.c.l.b16 %v38
    %v180 = vunpack.c.l.b16 %v39
    %v181 = vunpack.c.l.b16 %v40
    %v182 = vunpack.c.l.b16 %v41
    %v183 = vunpack.c.l.b16 %v42
    %v184 = vunpack.c.l.b16 %v43
    %v185 = vunpack.c.l.b16 %v44
    %v186 = vunpack.c.l.b16 %v45
    %v187 = vunpack.c.l.b16 %v46
    %v188 = vunpack.c.l.b16 %v47
    %v189 = vunpack.c.l.b16 %v48
    %v190 = vunpack.c.l.b16 %v49
    %v191 = vunpack.c.l.b16 %v50
    %v192 = vunpack.c.l.b16 %v51
    %v193 = vunpack.c.l.b16 %v52
    %v194 = vunpack.c.l.b16 %v53
    %v195 = vunpack.c.l.b16 %v54
    %v196 = vunpack.c.l.b16 %v55
    %v197 = vunpack.c.l.b16 %v56
    %v198 = vunpack.c.l.b16 %v57
    %v199 = vunpack.c.l.b16 %v58
    %v200 = vunpack.c.l.b16 %v59
    %v201 = vunpack.c.l.b16 %v60
    %v202 = vunpack.c.l.b16 %v61
    %v203 = vunpack.c.l.b16 %v62
    %v204 = vunpack.c.l.b16 %v63
    %v205 = vunpack.c.l.b16 %v64
    %v206 = vunpack.c.l.b16 %v65
    %v207 = vunpack.c.l.b16 %v66
    %v208 = vunpack.c.l.b16 %v67
    %v209 = vunpack.c.l.b16 %v68
    %v210 = vunpack.c.l.b16 %v69
    %v211 = vunpack.c.l.b16 %v70
    %v212 = vunpack.c.l.b16 %v71
    %v213 = vunpack.c.l.b16 %v72
    %v214 = vunpack.c.l.b16 %v73
    %v215 = vunpack.c.l.b16 %v74
    %v216 = vunpack.c.l.b16 %v75
    %v217 = vunpack.c.l.b16 %v76
    %v218 = vunpack.c.l.b16 %v77
    %v219 = vunpack.c.l.b16 %v78
    %v220 = vunpack.c.l.b16 %v79
    %v221 = vpack.c.b16 %v158, %v157
    %v222 = vpack.c.b16 %v160, %v159
    %v223 = vpack.c.b16 %v162, %v161
    %v224 = vpack.c.b16 %v164, %v163
    %v225 = vpack.c.b16 %v166, %v165
    %v226 = vpack.c.b16 %v168, %v167
    %v227 = vpack.c.b16 %v170, %v169
    %v228 = vpack.c.b16 %v172, %v171
    %v229 = vpack.c.b16 %v174, %v173
    %v230 = vpack.c.b16 %v176, %v175
    %v231 = vpack.c.b16 %v178, %v177
    %v232 = vpack.c.b16 %v180, %v179
    %v233 = vpack.c.b16 %v182, %v181
    %v234 = vpack.c.b16 %v184, %v183
    %v235 = vpack.c.b16 %v186, %v185
    %v236 = vpack.c.b16 %v188, %v187
    %v237 = vpack.c.b16 %v190, %v189
    %v238 = vpack.c.b16 %v192, %v191
    %v239 = vpack.c.b16 %v194, %v193
    %v240 = vpack.c.b16 %v196, %v195
    %v241 = vpack.c.b16 %v198, %v197
    %v242 = vpack.c.b16 %v200, %v199
    %v243 = vpack.c.b16 %v202, %v201
    %v244 = vpack.c.b16 %v204, %v203
    %v245 = vpack.c.b16 %v206, %v205
    %v246 = vpack.c.b16 %v208, %v207
    %v247 = vpack.c.b16 %v210, %v209
    %v248 = vpack.c.b16 %v212, %v211
    %v249 = vpack.c.b16 %v214, %v213
    %v250 = vpack.c.b16 %v216, %v215
    %v251 = vpack.c.b16 %v218, %v217
    %v252 = vpack.c.b16 %v220, %v219
    %v259 = vunpack.c.l.b16 %v80
    %v260 = vunpack.c.l.b16 %v81
    %v261 = vunpack.c.l.b16 %v82
    %v262 = vunpack.c.l.b16 %v83
    %v263 = vunpack.c.l.b16 %v84
    %v264 = vunpack.c.l.b16 %v85
    %v265 = vpack.c.b16 %v260, %v259
    %v266 = vpack.c.b16 %v262, %v261
    %v267 = vpack.c.b16 %v264, %v263
    %vm271 = vcmask 392192
    %v273 = vsel %vm271, %v221, 0
    %v276 = vsel %vm271, %v222, 0
    %v279 = vsel %vm271, %v223, 0
    %v282 = vsel %vm271, %v224, 0
    %v285 = vsel %vm271, %v225, 0
    %v288 = vsel %vm271, %v226, 0
    %v291 = vsel %vm271, %v227, 0
    %v294 = vsel %vm271, %v228, 0
    %v297 = vsel %vm271, %v229, 0
    %v300 = vsel %vm271, %v230, 0
    %v303 = vsel %vm271, %v231, 0
    %v306 = vsel %vm271, %v232, 0
    %v309 = vsel %vm271, %v233, 0
    %v312 = vsel %vm271, %v234, 0
    %v315 = vsel %vm271, %v235, 0
    %v318 = vsel %vm271, %v236, 0
    %v321 = vsel %vm271, %v237, 0
    %v324 = vsel %vm271, %v238, 0
    %v327 = vsel %vm271, %v239, 0
    %v330 = vsel %vm271, %v240, 0
    %v333 = vsel %vm271, %v241, 0
    %v336 = vsel %vm271, %v242, 0
    %v339 = vsel %vm271, %v243, 0
    %v342 = vsel %vm271, %v244, 0
    %v345 = vsel %vm271, %v245, 0
    %v348 = vsel %vm271, %v246, 0
    %v351 = vsel %vm271, %v247, 0
    %v354 = vsel %vm271, %v248, 0
    %v357 = vsel %vm271, %v249, 0
    %v360 = vsel %vm271, %v250, 0
    %v363 = vsel %vm271, %v251, 0
    %v366 = vsel %vm271, %v252, 0
    %368 = vmatprep.subr.bf16.mxu0 0
    %369 = vmatpush1.bf16.msra.mxu0 0
    %370 = vmatprep.subr.bf16.mxu0 0
    %371 = vmatpush1.bf16.msra.mxu0 0
    %372 = vmatprep.subr.bf16.mxu0 0
    %373 = vmatpush1.bf16.msra.mxu0 0
    %374 = vmatprep.subr.bf16.mxu0 0
    %375 = vmatpush1.bf16.msra.mxu0 0
    %376 = vmatprep.subr.bf16.mxu0 0
    %377 = vmatpush1.bf16.msra.mxu0 0
    %378 = vmatprep.subr.bf16.mxu0 0
    %379 = vmatpush1.bf16.msra.mxu0 %v267
    %380 = vmatprep.subr.bf16.mxu0 0
    %381 = vmatpush1.bf16.msra.mxu0 %v266
    %382 = vmatprep.subr.bf16.mxu0 0
    %383 = vmatpush1.bf16.msra.mxu0 %v265
    %384 = vmatprep.subr.bf16.mxu0 0
    %385 = vmatpush2.bf16.msra.mxu0 0
    %386 = vmatprep.subr.bf16.mxu0 0
    %387 = vmatpush2.bf16.msra.mxu0 0
    %388 = vmatprep.subr.bf16.mxu0 0
    %389 = vmatpush2.bf16.msra.mxu0 0
    %390 = vmatprep.subr.bf16.mxu0 0
    %391 = vmatpush2.bf16.msra.mxu0 0
    %392 = vmatprep.subr.bf16.mxu0 0
    %393 = vmatpush2.bf16.msra.mxu0 0
    %394 = vmatprep.subr.bf16.mxu0 0
    %395 = vmatpush2.bf16.msra.mxu0 0
    %396 = vmatprep.subr.bf16.mxu0 0
    %397 = vmatpush2.bf16.msra.mxu0 0
    %398 = vmatprep.subr.bf16.mxu0 0
    %399 = vmatpush2.bf16.msra.mxu0 0
    %400 = vmatprep.mubr.bf16.mxu0 0
    %401 = vmatmul.mubr.bf16.gmra.mxu0 %v273
    %v402 = vpop.f32.mrf.mxu0
    %v403 = vadd.f32 %v91, %v402
    %v404 = vpop.f32.mrf.mxu0
    %v405 = vpop.f32.mrf.mxu0
    %v406 = vadd.f32 %v91, %v405
    %v407 = vpop.f32.mrf.mxu0
    %408 = vmatprep.mubr.bf16.mxu0 0
    %409 = vmatmul.mubr.bf16.gmra.mxu0 %v276
    %v410 = vpop.f32.mrf.mxu0
    %v411 = vadd.f32 %v91, %v410
    %v412 = vpop.f32.mrf.mxu0
    %v413 = vpop.f32.mrf.mxu0
    %v414 = vadd.f32 %v91, %v413
    %v415 = vpop.f32.mrf.mxu0
    %416 = vmatprep.mubr.bf16.mxu0 0
    %417 = vmatmul.mubr.bf16.gmra.mxu0 %v279
    %v418 = vpop.f32.mrf.mxu0
    %v419 = vadd.f32 %v91, %v418
    %v420 = vpop.f32.mrf.mxu0
    %v421 = vpop.f32.mrf.mxu0
    %v422 = vadd.f32 %v91, %v421
    %v423 = vpop.f32.mrf.mxu0
    %424 = vmatprep.mubr.bf16.mxu0 0
    %425 = vmatmul.mubr.bf16.gmra.mxu0 %v282
    %v426 = vpop.f32.mrf.mxu0
    %v427 = vadd.f32 %v91, %v426
    %v428 = vpop.f32.mrf.mxu0
    %v429 = vpop.f32.mrf.mxu0
    %v430 = vadd.f32 %v91, %v429
    %v431 = vpop.f32.mrf.mxu0
    %432 = vmatprep.mubr.bf16.mxu0 0
    %433 = vmatmul.mubr.bf16.gmra.mxu0 %v285
    %v434 = vpop.f32.mrf.mxu0
    %v435 = vadd.f32 %v91, %v434
    %v436 = vpop.f32.mrf.mxu0
    %v437 = vpop.f32.mrf.mxu0
    %v438 = vadd.f32 %v91, %v437
    %v439 = vpop.f32.mrf.mxu0
    %440 = vmatprep.mubr.bf16.mxu0 0
    %441 = vmatmul.mubr.bf16.gmra.mxu0 %v288
    %v442 = vpop.f32.mrf.mxu0
    %v443 = vadd.f32 %v91, %v442
    %v444 = vpop.f32.mrf.mxu0
    %v445 = vpop.f32.mrf.mxu0
    %v446 = vadd.f32 %v91, %v445
    %v447 = vpop.f32.mrf.mxu0
    %448 = vmatprep.mubr.bf16.mxu0 0
    %449 = vmatmul.mubr.bf16.gmra.mxu0 %v291
    %v450 = vpop.f32.mrf.mxu0
    %v451 = vadd.f32 %v91, %v450
    %v452 = vpop.f32.mrf.mxu0
    %v453 = vpop.f32.mrf.mxu0
    %v454 = vadd.f32 %v91, %v453
    %v455 = vpop.f32.mrf.mxu0
    %456 = vmatprep.mubr.bf16.mxu0 0
    %457 = vmatmul.mubr.bf16.gmra.mxu0 %v294
    %v458 = vpop.f32.mrf.mxu0
    %v459 = vadd.f32 %v91, %v458
    %v460 = vpop.f32.mrf.mxu0
    %v461 = vpop.f32.mrf.mxu0
    %v462 = vadd.f32 %v91, %v461
    %v463 = vpop.f32.mrf.mxu0
    %464 = vmatprep.mubr.bf16.mxu0 0
    %465 = vmatmul.mubr.bf16.gmra.mxu0 %v297
    %v466 = vpop.f32.mrf.mxu0
    %v467 = vadd.f32 %v91, %v466
    %v468 = vpop.f32.mrf.mxu0
    %v469 = vpop.f32.mrf.mxu0
    %v470 = vadd.f32 %v91, %v469
    %v471 = vpop.f32.mrf.mxu0
    %472 = vmatprep.mubr.bf16.mxu0 0
    %473 = vmatmul.mubr.bf16.gmra.mxu0 %v300
    %v474 = vpop.f32.mrf.mxu0
    %v475 = vadd.f32 %v91, %v474
    %v476 = vpop.f32.mrf.mxu0
    %v477 = vpop.f32.mrf.mxu0
    %v478 = vadd.f32 %v91, %v477
    %v479 = vpop.f32.mrf.mxu0
    %480 = vmatprep.mubr.bf16.mxu0 0
    %481 = vmatmul.mubr.bf16.gmra.mxu0 %v303
    %v482 = vpop.f32.mrf.mxu0
    %v483 = vadd.f32 %v91, %v482
    %v484 = vpop.f32.mrf.mxu0
    %v485 = vpop.f32.mrf.mxu0
    %v486 = vadd.f32 %v91, %v485
    %v487 = vpop.f32.mrf.mxu0
    %488 = vmatprep.mubr.bf16.mxu0 0
    %489 = vmatmul.mubr.bf16.gmra.mxu0 %v306
    %v490 = vpop.f32.mrf.mxu0
    %v491 = vadd.f32 %v91, %v490
    %v492 = vpop.f32.mrf.mxu0
    %v493 = vpop.f32.mrf.mxu0
    %v494 = vadd.f32 %v91, %v493
    %v495 = vpop.f32.mrf.mxu0
    %496 = vmatprep.mubr.bf16.mxu0 0
    %497 = vmatmul.mubr.bf16.gmra.mxu0 %v309
    %v498 = vpop.f32.mrf.mxu0
    %v499 = vadd.f32 %v91, %v498
    %v500 = vpop.f32.mrf.mxu0
    %v501 = vpop.f32.mrf.mxu0
    %v502 = vadd.f32 %v91, %v501
    %v503 = vpop.f32.mrf.mxu0
    %504 = vmatprep.mubr.bf16.mxu0 0
    %505 = vmatmul.mubr.bf16.gmra.mxu0 %v312
    %v506 = vpop.f32.mrf.mxu0
    %v507 = vadd.f32 %v91, %v506
    %v508 = vpop.f32.mrf.mxu0
    %v509 = vpop.f32.mrf.mxu0
    %v510 = vadd.f32 %v91, %v509
    %v511 = vpop.f32.mrf.mxu0
    %512 = vmatprep.mubr.bf16.mxu0 0
    %513 = vmatmul.mubr.bf16.gmra.mxu0 %v315
    %v514 = vpop.f32.mrf.mxu0
    %v515 = vadd.f32 %v91, %v514
    %v516 = vpop.f32.mrf.mxu0
    %v517 = vpop.f32.mrf.mxu0
    %v518 = vadd.f32 %v91, %v517
    %v519 = vpop.f32.mrf.mxu0
    %520 = vmatprep.mubr.bf16.mxu0 0
    %521 = vmatmul.mubr.bf16.gmra.mxu0 %v318
    %v522 = vpop.f32.mrf.mxu0
    %v523 = vadd.f32 %v91, %v522
    %v524 = vpop.f32.mrf.mxu0
    %v525 = vpop.f32.mrf.mxu0
    %v526 = vadd.f32 %v91, %v525
    %v527 = vpop.f32.mrf.mxu0
    %528 = vmatprep.mubr.bf16.mxu0 0
    %529 = vmatmul.mubr.bf16.gmra.mxu0 %v321
    %v530 = vpop.f32.mrf.mxu0
    %v531 = vadd.f32 %v91, %v530
    %v532 = vpop.f32.mrf.mxu0
    %v533 = vpop.f32.mrf.mxu0
    %v534 = vadd.f32 %v91, %v533
    %v535 = vpop.f32.mrf.mxu0
    %536 = vmatprep.mubr.bf16.mxu0 0
    %537 = vmatmul.mubr.bf16.gmra.mxu0 %v324
    %v538 = vpop.f32.mrf.mxu0
    %v539 = vadd.f32 %v91, %v538
    %v540 = vpop.f32.mrf.mxu0
    %v541 = vpop.f32.mrf.mxu0
    %v542 = vadd.f32 %v91, %v541
    %v543 = vpop.f32.mrf.mxu0
    %544 = vmatprep.mubr.bf16.mxu0 0
    %545 = vmatmul.mubr.bf16.gmra.mxu0 %v327
    %v546 = vpop.f32.mrf.mxu0
    %v547 = vadd.f32 %v91, %v546
    %v548 = vpop.f32.mrf.mxu0
    %v549 = vpop.f32.mrf.mxu0
    %v550 = vadd.f32 %v91, %v549
    %v551 = vpop.f32.mrf.mxu0
    %552 = vmatprep.mubr.bf16.mxu0 0
    %553 = vmatmul.mubr.bf16.gmra.mxu0 %v330
    %v554 = vpop.f32.mrf.mxu0
    %v555 = vadd.f32 %v91, %v554
    %v556 = vpop.f32.mrf.mxu0
    %v557 = vpop.f32.mrf.mxu0
    %v558 = vadd.f32 %v91, %v557
    %v559 = vpop.f32.mrf.mxu0
    %560 = vmatprep.mubr.bf16.mxu0 0
    %561 = vmatmul.mubr.bf16.gmra.mxu0 %v333
    %v562 = vpop.f32.mrf.mxu0
    %v563 = vadd.f32 %v91, %v562
    %v564 = vpop.f32.mrf.mxu0
    %v565 = vpop.f32.mrf.mxu0
    %v566 = vadd.f32 %v91, %v565
    %v567 = vpop.f32.mrf.mxu0
    %568 = vmatprep.mubr.bf16.mxu0 0
    %569 = vmatmul.mubr.bf16.gmra.mxu0 %v336
    %v570 = vpop.f32.mrf.mxu0
    %v571 = vadd.f32 %v91, %v570
    %v572 = vpop.f32.mrf.mxu0
    %v573 = vpop.f32.mrf.mxu0
    %v574 = vadd.f32 %v91, %v573
    %v575 = vpop.f32.mrf.mxu0
    %576 = vmatprep.mubr.bf16.mxu0 0
    %577 = vmatmul.mubr.bf16.gmra.mxu0 %v339
    %v578 = vpop.f32.mrf.mxu0
    %v579 = vadd.f32 %v91, %v578
    %v580 = vpop.f32.mrf.mxu0
    %v581 = vpop.f32.mrf.mxu0
    %v582 = vadd.f32 %v91, %v581
    %v583 = vpop.f32.mrf.mxu0
    %584 = vmatprep.mubr.bf16.mxu0 0
    %585 = vmatmul.mubr.bf16.gmra.mxu0 %v342
    %v586 = vpop.f32.mrf.mxu0
    %v587 = vadd.f32 %v91, %v586
    %v588 = vpop.f32.mrf.mxu0
    %v589 = vpop.f32.mrf.mxu0
    %v590 = vadd.f32 %v91, %v589
    %v591 = vpop.f32.mrf.mxu0
    %592 = vmatprep.mubr.bf16.mxu0 0
    %593 = vmatmul.mubr.bf16.gmra.mxu0 %v345
    %v594 = vpop.f32.mrf.mxu0
    %v595 = vadd.f32 %v91, %v594
    %v596 = vpop.f32.mrf.mxu0
    %v597 = vpop.f32.mrf.mxu0
    %v598 = vadd.f32 %v91, %v597
    %v599 = vpop.f32.mrf.mxu0
    %600 = vmatprep.mubr.bf16.mxu0 0
    %601 = vmatmul.mubr.bf16.gmra.mxu0 %v348
    %v602 = vpop.f32.mrf.mxu0
    %v603 = vadd.f32 %v91, %v602
    %v604 = vpop.f32.mrf.mxu0
    %v605 = vpop.f32.mrf.mxu0
    %v606 = vadd.f32 %v91, %v605
    %v607 = vpop.f32.mrf.mxu0
    %608 = vmatprep.mubr.bf16.mxu0 0
    %609 = vmatmul.mubr.bf16.gmra.mxu0 %v351
    %v610 = vpop.f32.mrf.mxu0
    %v611 = vadd.f32 %v91, %v610
    %v612 = vpop.f32.mrf.mxu0
    %v613 = vpop.f32.mrf.mxu0
    %v614 = vadd.f32 %v91, %v613
    %v615 = vpop.f32.mrf.mxu0
    %616 = vmatprep.mubr.bf16.mxu0 0
    %617 = vmatmul.mubr.bf16.gmra.mxu0 %v354
    %v618 = vpop.f32.mrf.mxu0
    %v619 = vadd.f32 %v91, %v618
    %v620 = vpop.f32.mrf.mxu0
    %v621 = vpop.f32.mrf.mxu0
    %v622 = vadd.f32 %v91, %v621
    %v623 = vpop.f32.mrf.mxu0
    %624 = vmatprep.mubr.bf16.mxu0 0
    %625 = vmatmul.mubr.bf16.gmra.mxu0 %v357
    %v626 = vpop.f32.mrf.mxu0
    %v627 = vadd.f32 %v91, %v626
    %v628 = vpop.f32.mrf.mxu0
    %v629 = vpop.f32.mrf.mxu0
    %v630 = vadd.f32 %v91, %v629
    %v631 = vpop.f32.mrf.mxu0
    %632 = vmatprep.mubr.bf16.mxu0 0
    %633 = vmatmul.mubr.bf16.gmra.mxu0 %v360
    %v634 = vpop.f32.mrf.mxu0
    %v635 = vadd.f32 %v91, %v634
    %v636 = vpop.f32.mrf.mxu0
    %v637 = vpop.f32.mrf.mxu0
    %v638 = vadd.f32 %v91, %v637
    %v639 = vpop.f32.mrf.mxu0
    %640 = vmatprep.mubr.bf16.mxu0 0
    %641 = vmatmul.mubr.bf16.gmra.mxu0 %v363
    %v642 = vpop.f32.mrf.mxu0
    %v643 = vadd.f32 %v91, %v642
    %v644 = vpop.f32.mrf.mxu0
    %v645 = vpop.f32.mrf.mxu0
    %v646 = vadd.f32 %v91, %v645
    %v647 = vpop.f32.mrf.mxu0
    %648 = vmatprep.mubr.bf16.mxu0 0
    %649 = vmatmul.mubr.bf16.gmra.mxu0 %v366
    %v650 = vpop.f32.mrf.mxu0
    %v651 = vadd.f32 %v91, %v650
    %v652 = vpop.f32.mrf.mxu0
    %v653 = vpop.f32.mrf.mxu0
    %v654 = vadd.f32 %v91, %v653
    %v655 = vpop.f32.mrf.mxu0
    %656 = vdwg.mxu0
    %v657 = vmax.f32 %v403, 0.0
    %v658 = vmax.f32 %v406, 0.0
    %v659 = vmax.f32 %v411, 0.0
    %v660 = vmax.f32 %v414, 0.0
    %v661 = vmax.f32 %v419, 0.0
    %v662 = vmax.f32 %v422, 0.0
    %v663 = vmax.f32 %v427, 0.0
    %v664 = vmax.f32 %v430, 0.0
    %v665 = vmax.f32 %v435, 0.0
    %v666 = vmax.f32 %v438, 0.0
    %v667 = vmax.f32 %v443, 0.0
    %v668 = vmax.f32 %v446, 0.0
    %v669 = vmax.f32 %v451, 0.0
    %v670 = vmax.f32 %v454, 0.0
    %v671 = vmax.f32 %v459, 0.0
    %v672 = vmax.f32 %v462, 0.0
    %v673 = vmax.f32 %v467, 0.0
    %v674 = vmax.f32 %v470, 0.0
    %v675 = vmax.f32 %v475, 0.0
    %v676 = vmax.f32 %v478, 0.0
    %v677 = vmax.f32 %v483, 0.0
    %v678 = vmax.f32 %v486, 0.0
    %v679 = vmax.f32 %v491, 0.0
    %v680 = vmax.f32 %v494, 0.0
    %v681 = vmax.f32 %v499, 0.0
    %v682 = vmax.f32 %v502, 0.0
    %v683 = vmax.f32 %v507, 0.0
    %v684 = vmax.f32 %v510, 0.0
    %v685 = vmax.f32 %v515, 0.0
    %v686 = vmax.f32 %v518, 0.0
    %v687 = vmax.f32 %v523, 0.0
    %v688 = vmax.f32 %v526, 0.0
    %v689 = vmax.f32 %v531, 0.0
    %v690 = vmax.f32 %v534, 0.0
    %v691 = vmax.f32 %v539, 0.0
    %v692 = vmax.f32 %v542, 0.0
    %v693 = vmax.f32 %v547, 0.0
    %v694 = vmax.f32 %v550, 0.0
    %v695 = vmax.f32 %v555, 0.0
    %v696 = vmax.f32 %v558, 0.0
    %v697 = vmax.f32 %v563, 0.0
    %v698 = vmax.f32 %v566, 0.0
    %v699 = vmax.f32 %v571, 0.0
    %v700 = vmax.f32 %v574, 0.0
    %v701 = vmax.f32 %v579, 0.0
    %v702 = vmax.f32 %v582, 0.0
    %v703 = vmax.f32 %v587, 0.0
    %v704 = vmax.f32 %v590, 0.0
    %v705 = vmax.f32 %v595, 0.0
    %v706 = vmax.f32 %v598, 0.0
    %v707 = vmax.f32 %v603, 0.0
    %v708 = vmax.f32 %v606, 0.0
    %v709 = vmax.f32 %v611, 0.0
    %v710 = vmax.f32 %v614, 0.0
    %v711 = vmax.f32 %v619, 0.0
    %v712 = vmax.f32 %v622, 0.0
    %v713 = vmax.f32 %v627, 0.0
    %v714 = vmax.f32 %v630, 0.0
    %v715 = vmax.f32 %v635, 0.0
    %v716 = vmax.f32 %v638, 0.0
    %v717 = vmax.f32 %v643, 0.0
    %v718 = vmax.f32 %v646, 0.0
    %v719 = vmax.f32 %v651, 0.0
    %v720 = vmax.f32 %v654, 0.0
    %721 = vst [vmem:[#allocation2] sm:$0xff] %v657
    %722 = vst [vmem:[#allocation2 + $0x8] sm:$0xff] %v658
    %723 = vst [vmem:[#allocation2 + $0x10] sm:$0xff] %v659
    %724 = vst [vmem:[#allocation2 + $0x18] sm:$0xff] %v660
    %725 = vst [vmem:[#allocation2 + $0x20] sm:$0xff] %v661
    %726 = vst [vmem:[#allocation2 + $0x28] sm:$0xff] %v662
    %727 = vst [vmem:[#allocation2 + $0x30] sm:$0xff] %v663
    %728 = vst [vmem:[#allocation2 + $0x38] sm:$0xff] %v664
    %729 = vst [vmem:[#allocation2 + $0x40] sm:$0xff] %v665
    %730 = vst [vmem:[#allocation2 + $0x48] sm:$0xff] %v666
    %731 = vst [vmem:[#allocation2 + $0x50] sm:$0xff] %v667
    %732 = vst [vmem:[#allocation2 + $0x58] sm:$0xff] %v668
    %733 = vst [vmem:[#allocation2 + $0x60] sm:$0xff] %v669
    %734 = vst [vmem:[#allocation2 + $0x68] sm:$0xff] %v670
    %735 = vst [vmem:[#allocation2 + $0x70] sm:$0xff] %v671
    %736 = vst [vmem:[#allocation2 + $0x78] sm:$0xff] %v672
    %737 = vst [vmem:[#allocation2 + $0x80] sm:$0xff] %v673
    %738 = vst [vmem:[#allocation2 + $0x88] sm:$0xff] %v674
    %739 = vst [vmem:[#allocation2 + $0x90] sm:$0xff] %v675
    %740 = vst [vmem:[#allocation2 + $0x98] sm:$0xff] %v676
    %741 = vst [vmem:[#allocation2 + $0xa0] sm:$0xff] %v677
    %742 = vst [vmem:[#allocation2 + $0xa8] sm:$0xff] %v678
    %743 = vst [vmem:[#allocation2 + $0xb0] sm:$0xff] %v679
    %744 = vst [vmem:[#allocation2 + $0xb8] sm:$0xff] %v680
    %745 = vst [vmem:[#allocation2 + $0xc0] sm:$0xff] %v681
    %746 = vst [vmem:[#allocation2 + $0xc8] sm:$0xff] %v682
    %747 = vst [vmem:[#allocation2 + $0xd0] sm:$0xff] %v683
    %748 = vst [vmem:[#allocation2 + $0xd8] sm:$0xff] %v684
    %749 = vst [vmem:[#allocation2 + $0xe0] sm:$0xff] %v685
    %750 = vst [vmem:[#allocation2 + $0xe8] sm:$0xff] %v686
    %751 = vst [vmem:[#allocation2 + $0xf0] sm:$0xff] %v687
    %752 = vst [vmem:[#allocation2 + $0xf8] sm:$0xff] %v688
    %753 = vst [vmem:[#allocation2 + $0x100] sm:$0xff] %v689
    %754 = vst [vmem:[#allocation2 + $0x108] sm:$0xff] %v690
    %755 = vst [vmem:[#allocation2 + $0x110] sm:$0xff] %v691
    %756 = vst [vmem:[#allocation2 + $0x118] sm:$0xff] %v692
    %757 = vst [vmem:[#allocation2 + $0x120] sm:$0xff] %v693
    %758 = vst [vmem:[#allocation2 + $0x128] sm:$0xff] %v694
    %759 = vst [vmem:[#allocation2 + $0x130] sm:$0xff] %v695
    %760 = vst [vmem:[#allocation2 + $0x138] sm:$0xff] %v696
    %761 = vst [vmem:[#allocation2 + $0x140] sm:$0xff] %v697
    %762 = vst [vmem:[#allocation2 + $0x148] sm:$0xff] %v698
    %763 = vst [vmem:[#allocation2 + $0x150] sm:$0xff] %v699
    %764 = vst [vmem:[#allocation2 + $0x158] sm:$0xff] %v700
    %765 = vst [vmem:[#allocation2 + $0x160] sm:$0xff] %v701
    %766 = vst [vmem:[#allocation2 + $0x168] sm:$0xff] %v702
    %767 = vst [vmem:[#allocation2 + $0x170] sm:$0xff] %v703
    %768 = vst [vmem:[#allocation2 + $0x178] sm:$0xff] %v704
    %769 = vst [vmem:[#allocation2 + $0x180] sm:$0xff] %v705
    %770 = vst [vmem:[#allocation2 + $0x188] sm:$0xff] %v706
    %771 = vst [vmem:[#allocation2 + $0x190] sm:$0xff] %v707
    %772 = vst [vmem:[#allocation2 + $0x198] sm:$0xff] %v708
    %773 = vst [vmem:[#allocation2 + $0x1a0] sm:$0xff] %v709
    %774 = vst [vmem:[#allocation2 + $0x1a8] sm:$0xff] %v710
    %775 = vst [vmem:[#allocation2 + $0x1b0] sm:$0xff] %v711
    %776 = vst [vmem:[#allocation2 + $0x1b8] sm:$0xff] %v712
    %777 = vst [vmem:[#allocation2 + $0x1c0] sm:$0xff] %v713
    %778 = vst [vmem:[#allocation2 + $0x1c8] sm:$0xff] %v714
    %779 = vst [vmem:[#allocation2 + $0x1d0] sm:$0xff] %v715
    %780 = vst [vmem:[#allocation2 + $0x1d8] sm:$0xff] %v716
    %781 = vst [vmem:[#allocation2 + $0x1e0] sm:$0xff] %v717
    %782 = vst [vmem:[#allocation2 + $0x1e8] sm:$0xff] %v718
    %783 = vst [vmem:[#allocation2 + $0x1f0] sm:$0xff] %v719
    %784 = vst [vmem:[#allocation2 + $0x1f8] sm:$0xff] %v720
    // Predicated region
    $region14: #{tpu_custom_call.1} parent=1 // pred_check
      _
    $region15: #{tpu_custom_call.1} parent=1 // pred_check_branch
      %786 = sbr.rel (0) target = $region17
    $region16: #{tpu_custom_call.1} parent=1 // pred_region
      %s788 = ssub.s32 8192, 8192
      %789 = vsyncadd [#allocation3], %s788
      %s790 = sshll.u32 [#allocation2], 4
      %s791 = int_to_ptr.vmem [resolvable:$true] %s790
      %796 = dma.vmem_to_hbm [thread:$0]  %s791, 8192, %s3, [#allocation3], 128, 128, 8
    $region17: #{tpu_custom_call.1} parent=1 // pred_fallthru
      _
    // Predicated region
    $region18: #{tpu_custom_call.1} parent=1 // pred_check
      _
    $region19: #{tpu_custom_call.1} parent=1 // pred_check_branch
      %798 = sbr.rel (0) target = $region21
    $region20: #{tpu_custom_call.1} parent=1 // pred_region
      %799 = dma.done [#allocation3], 8192
    $region21: #{tpu_custom_call.1} parent=1 // pred_fallthru
      _
    %800 = vsyncpa [#allocation3], 1

</llo_original>
